<compile_context>
chip_gen: v7x
topology: tpu7x:2x2x1
jax: 0.10.0
libtpu: 0.0.40
codegen_flags: <defaults>
</compile_context>

<pallas_src>
import functools
import math

import jax
import jax.numpy as jnp
from jax.experimental import pallas as pl
from jax.experimental.pallas import tpu as pltpu


# ----------------------------------------------------------------------------
# Kernel: whole 3-layer MLP per batch tile, fully VMEM resident.
# ----------------------------------------------------------------------------
def _critic_mlp_kernel(state_ref, action_ref, w1s_ref, w1a_ref, w2_ref,
                       w3_ref, biases_ref, q_ref, *,
                       n_features, n_output, mxu_dtype):
    biases = biases_ref[...].astype(jnp.float32)          # (3, F_pad)
    b1 = biases[0:1, :n_features]                         # (1, F)
    b2 = biases[1:2, :n_features]                         # (1, F)
    b3 = biases[2:3, :n_output]                           # (1, n_output)

    # Layer 1: fused "concat" -> split matmul over the pre-split W1 halves.
    h1 = jnp.dot(state_ref[...].astype(mxu_dtype), w1s_ref[...],
                 preferred_element_type=jnp.float32)
    h1 = h1 + jnp.dot(action_ref[...].astype(mxu_dtype), w1a_ref[...],
                      preferred_element_type=jnp.float32)
    h1 = jnp.maximum(h1 + b1, 0.0)                        # (bm, F) f32

    # Layer 2.
    h2 = jnp.dot(h1.astype(mxu_dtype), w2_ref[...],
                 preferred_element_type=jnp.float32)
    h2 = jnp.maximum(h2 + b2, 0.0)                        # (bm, F) f32

    # Layer 3.
    if n_output == 1:
        # W3 arrives as a lane-major (1, F) row: VPU multiply + cross-lane
        # reduce instead of an N=1 (127/128-lanes-idle) MXU pass.
        w3_row = w3_ref[...].astype(jnp.float32)
        q = jnp.sum(h2 * w3_row, axis=-1, keepdims=True) + b3
    else:
        q = jnp.dot(h2.astype(mxu_dtype), w3_ref[...],
                    preferred_element_type=jnp.float32) + b3

    q_ref[...] = q.astype(q_ref.dtype)


# ----------------------------------------------------------------------------
# Wrapper: parameter plumbing (split W1, pack biases) + pallas_call + squeeze.
# ----------------------------------------------------------------------------
def critic_forward(state, action, params, *, batch_block=256,
                   mxu_dtype=jnp.float32):
    state = state.astype(jnp.float32)
    action = action.astype(jnp.float32)
    B, n_state = state.shape
    n_action = action.shape[1]

    w1 = params["w1"].astype(jnp.float32)                 # (n_input, F)
    w2 = params["w2"].astype(jnp.float32)                 # (F, F)
    w3 = params["w3"].astype(jnp.float32)                 # (F, n_output)
    n_features = w1.shape[1]
    n_output = w3.shape[1]

    # Pre-split W1 so the (B, n_input) concat never materializes.
    w1s = w1[:n_state].astype(mxu_dtype)                  # (n_state, F)
    w1a = w1[n_state:].astype(mxu_dtype)                  # (n_action, F)
    w2_in = w2.astype(mxu_dtype)
    # Single Q head -> (1, F) row for the VPU path; multi-head (fused twin
    # critics) keeps (F, n_heads) so the final MXU matmul is lane-dense.
    w3_in = (w3.reshape(1, n_features) if n_output == 1 else w3).astype(mxu_dtype)

    # Pack the three tiny bias vectors into one VMEM input (fewer DMAs).
    f_pad = max(n_features, n_output)
    biases = jnp.zeros((3, f_pad), jnp.float32)
    biases = biases.at[0, :n_features].set(params["b1"].reshape(-1))
    biases = biases.at[1, :n_features].set(params["b2"].reshape(-1))
    biases = biases.at[2, :n_output].set(params["b3"].reshape(-1))

    # Batch tiling: single grid step for small / odd batches, `parallel`
    # tiles of `batch_block` rows for large evenly-divisible replay batches.
    if B >= 2 * batch_block and B % batch_block == 0:
        bm = batch_block
    else:
        bm = B
    grid = (B // bm,)

    row = lambda i: (i, 0)      # batch-tiled operands
    rep = lambda i: (0, 0)      # weights / biases: same block every step

    flops = 2 * B * n_features * (n_state + n_action + n_features + n_output)
    bytes_accessed = (4 * (state.size + action.size + biases.size
                           + B * n_output)
                      + jnp.dtype(mxu_dtype).itemsize
                      * (w1.size + w2.size + w3.size))

    kernel = functools.partial(_critic_mlp_kernel, n_features=n_features,
                               n_output=n_output, mxu_dtype=mxu_dtype)

    q = pl.pallas_call(
        kernel,
        out_shape=jax.ShapeDtypeStruct((B, n_output), jnp.float32),
        grid=grid,
        in_specs=[
            pl.BlockSpec((bm, n_state), row),
            pl.BlockSpec((bm, n_action), row),
            pl.BlockSpec(w1s.shape, rep),
            pl.BlockSpec(w1a.shape, rep),
            pl.BlockSpec(w2_in.shape, rep),
            pl.BlockSpec(w3_in.shape, rep),
            pl.BlockSpec(biases.shape, rep),
        ],
        out_specs=pl.BlockSpec((bm, n_output), row),
        compiler_params=pltpu.CompilerParams(
            dimension_semantics=("parallel",)),
        cost_estimate=pl.CostEstimate(flops=int(flops), transcendentals=0,
                                      bytes_accessed=int(bytes_accessed)),
    )(state, action, w1s, w1a, w2_in, w3_in, biases)

    # torch.squeeze semantics: drop ALL size-1 dims ((B,1)->(B,); B==1 -> 0-d).
    return jnp.squeeze(q)


# ----------------------------------------------------------------------------
# Deterministic init mirroring the PyTorch module:
#   weights: xavier_uniform, gain('relu')=sqrt(2) for h1/h2, gain 1 for h3
#   biases : nn.Linear default uniform(-1/sqrt(fan_in), 1/sqrt(fan_in))
# Weights stored transposed relative to PyTorch: (in, out).
# ----------------------------------------------------------------------------
def init_params(key, n_input, n_features, n_output):
    def xavier_uniform(k, fan_in, fan_out, gain):
        bound = gain * math.sqrt(6.0 / (fan_in + fan_out))
        return jax.random.uniform(k, (fan_in, fan_out), jnp.float32,
                                  minval=-bound, maxval=bound)

    def bias_uniform(k, fan_in, fan_out):
        bound = 1.0 / math.sqrt(fan_in)
        return jax.random.uniform(k, (fan_out,), jnp.float32,
                                  minval=-bound, maxval=bound)

    ks = jax.random.split(key, 6)
    relu_gain = math.sqrt(2.0)
    return {
        "w1": xavier_uniform(ks[0], n_input, n_features, relu_gain),
        "b1": bias_uniform(ks[1], n_input, n_features),
        "w2": xavier_uniform(ks[2], n_features, n_features, relu_gain),
        "b2": bias_uniform(ks[3], n_features, n_features),
        "w3": xavier_uniform(ks[4], n_features, n_output, 1.0),
        "b3": bias_uniform(ks[5], n_features, n_output),
    }


def _reference_forward(state, action, params):
    sa = jnp.concatenate([state.astype(jnp.float32),
                          action.astype(jnp.float32)], axis=1)
    h1 = jnp.maximum(sa @ params["w1"] + params["b1"], 0.0)
    h2 = jnp.maximum(h1 @ params["w2"] + params["b2"], 0.0)
    return jnp.squeeze(h2 @ params["w3"] + params["b3"])


if __name__ == "__main__":
    # Pendulum-SAC-like critic: state_dim=6, action_dim=2 -> n_input=8,
    # n_features=32, output_shape=(1,) -> n_output=1.
    state_dim, action_dim = 6, 2
    n_input = state_dim + action_dim
    n_features = 32
    n_output = 1

    key = jax.random.PRNGKey(0)
    (k_params, k_s1, k_a1, k_s2, k_a2, k_s3, k_a3) = jax.random.split(key, 7)
    params = init_params(k_params, n_input, n_features, n_output)

    # --- small batch (single grid step) ---
    batch = 8
    state = jax.random.normal(k_s1, (batch, state_dim), jnp.float32)
    action = jax.random.normal(k_a1, (batch, action_dim), jnp.float32)
    q = jax.block_until_ready(critic_forward(state, action, params))
    q_ref = _reference_forward(state, action, params)
    assert q.shape == (batch,), q.shape
    assert jnp.allclose(q, q_ref, atol=1e-5, rtol=1e-5)

    # --- odd batch (exercises the single-block fallback path) ---
    odd_batch = 33
    state_o = jax.random.normal(k_s3, (odd_batch, state_dim), jnp.float32)
    action_o = jax.random.normal(k_a3, (odd_batch, action_dim), jnp.float32)
    q_o = jax.block_until_ready(critic_forward(state_o, action_o, params))
    q_o_ref = _reference_forward(state_o, action_o, params)
    assert q_o.shape == (odd_batch,), q_o.shape
    assert jnp.allclose(q_o, q_o_ref, atol=1e-5, rtol=1e-5)

    # --- replay-sized batch (exercises the parallel batch-tiled grid path) ---
    big_batch = 512
    state_b = jax.random.normal(k_s2, (big_batch, state_dim), jnp.float32)
    action_b = jax.random.normal(k_a2, (big_batch, action_dim), jnp.float32)
    q_b = jax.block_until_ready(critic_forward(state_b, action_b, params))
    q_b_ref = _reference_forward(state_b, action_b, params)
    assert q_b.shape == (big_batch,), q_b.shape
    assert jnp.allclose(q_b, q_b_ref, atol=1e-5, rtol=1e-5)

    print("KERNEL_OK")
</pallas_src>

<mosaic_0001>
module attributes {stable_mosaic.version = 11 : i64} {
  func.func @_critic_mlp_kernel(%arg0: i32, %arg1: memref<8x6xf32, #tpu.memory_space<vmem>>, %arg2: memref<8x2xf32, #tpu.memory_space<vmem>>, %arg3: memref<6x32xf32, #tpu.memory_space<vmem>>, %arg4: memref<2x32xf32, #tpu.memory_space<vmem>>, %arg5: memref<32x32xf32, #tpu.memory_space<vmem>>, %arg6: memref<1x32xf32, #tpu.memory_space<vmem>>, %arg7: memref<3x32xf32, #tpu.memory_space<vmem>>, %arg8: memref<8x1xf32, #tpu.memory_space<vmem>>) attributes {dimension_semantics = [#tpu.dimension_semantics<parallel>], iteration_bounds = array<i64: 1>, scalar_prefetch = 0 : i64, scratch_operands = 0 : i64, tpu.core_type = #tpu.core_type<tc>, window_params = [{transform_indices = @transform_0, window_bounds = array<i64: 8, 6>}, {transform_indices = @transform_1, window_bounds = array<i64: 8, 2>}, {pipeline_mode = #tpu.pipeline_mode<synchronous>, transform_indices = @transform_2, window_bounds = array<i64: 6, 32>}, {pipeline_mode = #tpu.pipeline_mode<synchronous>, transform_indices = @transform_3, window_bounds = array<i64: 2, 32>}, {pipeline_mode = #tpu.pipeline_mode<synchronous>, transform_indices = @transform_4, window_bounds = array<i64: 32, 32>}, {pipeline_mode = #tpu.pipeline_mode<synchronous>, transform_indices = @transform_5, window_bounds = array<i64: 1, 32>}, {pipeline_mode = #tpu.pipeline_mode<synchronous>, transform_indices = @transform_6, window_bounds = array<i64: 3, 32>}, {transform_indices = @transform_7, window_bounds = array<i64: 8, 1>}]} {
    %c0 = arith.constant 0 : index
    %c0_0 = arith.constant 0 : index
    %0 = vector.load %arg7[%c0, %c0_0] : memref<3x32xf32, #tpu.memory_space<vmem>>, vector<3x32xf32>
    %1 = vector.extract_strided_slice %0 {offsets = [0, 0], sizes = [1, 32], strides = [1, 1]} : vector<3x32xf32> to vector<1x32xf32>
    %2 = vector.extract_strided_slice %0 {offsets = [1, 0], sizes = [1, 32], strides = [1, 1]} : vector<3x32xf32> to vector<1x32xf32>
    %3 = vector.extract_strided_slice %0 {offsets = [2, 0], sizes = [1, 1], strides = [1, 1]} : vector<3x32xf32> to vector<1x1xf32>
    %c0_1 = arith.constant 0 : index
    %c0_2 = arith.constant 0 : index
    %4 = vector.load %arg1[%c0_1, %c0_2] : memref<8x6xf32, #tpu.memory_space<vmem>>, vector<8x6xf32>
    %c0_3 = arith.constant 0 : index
    %c0_4 = arith.constant 0 : index
    %5 = vector.load %arg3[%c0_3, %c0_4] : memref<6x32xf32, #tpu.memory_space<vmem>>, vector<6x32xf32>
    %cst = arith.constant dense<0.000000e+00> : vector<8x32xf32>
    %6 = tpu.matmul %4, %5, %cst {dimension_numbers = #tpu.dot_dimension_numbers<[1], [0], [0], [1], [0, 0, 1, 1], [], []>} : vector<8x6xf32>, vector<6x32xf32>, vector<8x32xf32> -> vector<8x32xf32>
    %c0_5 = arith.constant 0 : index
    %c0_6 = arith.constant 0 : index
    %7 = vector.load %arg2[%c0_5, %c0_6] : memref<8x2xf32, #tpu.memory_space<vmem>>, vector<8x2xf32>
    %c0_7 = arith.constant 0 : index
    %c0_8 = arith.constant 0 : index
    %8 = vector.load %arg4[%c0_7, %c0_8] : memref<2x32xf32, #tpu.memory_space<vmem>>, vector<2x32xf32>
    %cst_9 = arith.constant dense<0.000000e+00> : vector<8x32xf32>
    %9 = tpu.matmul %7, %8, %cst_9 {dimension_numbers = #tpu.dot_dimension_numbers<[1], [0], [0], [1], [0, 0, 1, 1], [], []>} : vector<8x2xf32>, vector<2x32xf32>, vector<8x32xf32> -> vector<8x32xf32>
    %10 = arith.addf %6, %9 : vector<8x32xf32>
    %11 = vector.broadcast %1 : vector<1x32xf32> to vector<8x32xf32>
    %12 = arith.addf %10, %11 : vector<8x32xf32>
    %cst_10 = arith.constant 0.000000e+00 : f32
    %13 = vector.broadcast %cst_10 : f32 to vector<8x32xf32>
    %14 = arith.maximumf %12, %13 : vector<8x32xf32>
    %c0_11 = arith.constant 0 : index
    %c0_12 = arith.constant 0 : index
    %15 = vector.load %arg5[%c0_11, %c0_12] : memref<32x32xf32, #tpu.memory_space<vmem>>, vector<32x32xf32>
    %cst_13 = arith.constant dense<0.000000e+00> : vector<8x32xf32>
    %16 = tpu.matmul %14, %15, %cst_13 {dimension_numbers = #tpu.dot_dimension_numbers<[1], [0], [0], [1], [0, 0, 1, 1], [], []>} : vector<8x32xf32>, vector<32x32xf32>, vector<8x32xf32> -> vector<8x32xf32>
    %17 = vector.broadcast %2 : vector<1x32xf32> to vector<8x32xf32>
    %18 = arith.addf %16, %17 : vector<8x32xf32>
    %cst_14 = arith.constant 0.000000e+00 : f32
    %19 = vector.broadcast %cst_14 : f32 to vector<8x32xf32>
    %20 = arith.maximumf %18, %19 : vector<8x32xf32>
    %c0_15 = arith.constant 0 : index
    %c0_16 = arith.constant 0 : index
    %21 = vector.load %arg6[%c0_15, %c0_16] : memref<1x32xf32, #tpu.memory_space<vmem>>, vector<1x32xf32>
    %22 = vector.broadcast %21 : vector<1x32xf32> to vector<8x32xf32>
    %23 = arith.mulf %20, %22 : vector<8x32xf32>
    %cst_17 = arith.constant dense<0.000000e+00> : vector<8xf32>
    %24 = vector.multi_reduction <add>, %23, %cst_17 [1] : vector<8x32xf32> to vector<8xf32>
    %25 = vector.shape_cast %24 : vector<8xf32> to vector<8x1xf32>
    %26 = vector.broadcast %3 : vector<1x1xf32> to vector<8x1xf32>
    %27 = arith.addf %25, %26 : vector<8x1xf32>
    %c0_18 = arith.constant 0 : index
    %c0_19 = arith.constant 0 : index
    %28 = vector.load %arg8[%c0_18, %c0_19] : memref<8x1xf32, #tpu.memory_space<vmem>>, vector<8x1xf32>
    tpu.vector_store %arg8[%c0_18, %c0_19], %27 {strides = array<i32>} : memref<8x1xf32, #tpu.memory_space<vmem>>, vector<8x1xf32>,
    return
  }
  func.func @transform_0(%arg0: i32) -> (i32, i32) {
    %c0_i32 = arith.constant 0 : i32
    %c0_i32_0 = arith.constant 0 : i32
    return %arg0, %c0_i32 : i32, i32
  }
  func.func @transform_1(%arg0: i32) -> (i32, i32) {
    %c0_i32 = arith.constant 0 : i32
    %c0_i32_0 = arith.constant 0 : i32
    return %arg0, %c0_i32 : i32, i32
  }
  func.func @transform_2(%arg0: i32) -> (i32, i32) {
    %c0_i32 = arith.constant 0 : i32
    %c0_i32_0 = arith.constant 0 : i32
    %c0_i32_1 = arith.constant 0 : i32
    return %c0_i32, %c0_i32_0 : i32, i32
  }
  func.func @transform_3(%arg0: i32) -> (i32, i32) {
    %c0_i32 = arith.constant 0 : i32
    %c0_i32_0 = arith.constant 0 : i32
    %c0_i32_1 = arith.constant 0 : i32
    return %c0_i32, %c0_i32_0 : i32, i32
  }
  func.func @transform_4(%arg0: i32) -> (i32, i32) {
    %c0_i32 = arith.constant 0 : i32
    %c0_i32_0 = arith.constant 0 : i32
    %c0_i32_1 = arith.constant 0 : i32
    return %c0_i32, %c0_i32_0 : i32, i32
  }
  func.func @transform_5(%arg0: i32) -> (i32, i32) {
    %c0_i32 = arith.constant 0 : i32
    %c0_i32_0 = arith.constant 0 : i32
    %c0_i32_1 = arith.constant 0 : i32
    return %c0_i32, %c0_i32_0 : i32, i32
  }
  func.func @transform_6(%arg0: i32) -> (i32, i32) {
    %c0_i32 = arith.constant 0 : i32
    %c0_i32_0 = arith.constant 0 : i32
    %c0_i32_1 = arith.constant 0 : i32
    return %c0_i32, %c0_i32_0 : i32, i32
  }
  func.func @transform_7(%arg0: i32) -> (i32, i32) {
    %c0_i32 = arith.constant 0 : i32
    %c0_i32_0 = arith.constant 0 : i32
    return %arg0, %c0_i32 : i32, i32
  }
}

</mosaic_0001>

<llo_original>
// kernel: tpu_custom_call.1
$region0: #{tpu_custom_call.1}
  #allocation0 [shape = 'u32[]', space=smem, size = 0x4, offset = 0x4, fixed_abs, tag = 'smem constant byte address 0x4 - core index']
  #allocation1 [shape = 'u32[144,128]{1,0:T(1,128)}', space=vmem, size = 0x12000, scoped, tag = 'internal scratch']
  %s0 = inlined_call_operand.vmem [shape: f32[8,6], index: 0, kind: input, shape index: {}]
  %s1 = inlined_call_operand.vmem [shape: f32[8,2], index: 1, kind: input, shape index: {}]
  %s2 = inlined_call_operand.vmem [shape: f32[6,32], index: 2, kind: input, shape index: {}]
  %s3 = inlined_call_operand.hbm [shape: f32[2,32], index: 3, kind: input, shape index: {}]
  %s4 = inlined_call_operand.hbm [shape: f32[32,32], index: 4, kind: input, shape index: {}]
  %s5 = inlined_call_operand.vmem [shape: f32[1,32], index: 5, kind: input, shape index: {}]
  %s6 = inlined_call_operand.vmem [shape: f32[3,32], index: 6, kind: input, shape index: {}]
  %s7 = inlined_call_operand.vmem [shape: f32[8,1], index: 7, kind: output, shape index: {}]
  %s8 = sld [smem:[#allocation0]]
  $region46: #{tpu_custom_call.1} parent=0
    _
  %s10 = ssub.s32 1, %s8
  %s11 = scalar_select 0, %s10, %s8
  $region1: #{tpu_custom_call.1} parent=0
    #allocation2 [shape = 'u8[1024]{0}', space=vmem, size = 0x400, scoped, tag = 'input window, operand 3, single buffered']
    #allocation3 [shape = 's32[1]{0}', space=sflag, size = 0x4, scoped, tag = 'scoped memory for tpu_custom_call.1']
    #allocation4 [shape = 'u8[16384]{0}', space=vmem, size = 0x4000, scoped, tag = 'input window, operand 4, single buffered']
    #allocation5 [shape = 's32[1]{0}', space=sflag, size = 0x4, scoped, tag = 'scoped memory for tpu_custom_call.1']
    %12 = vsyncpa [#allocation3], 0
    %13 = vsyncpa [#allocation5], 0
    // Predicated region
    $region2: #{tpu_custom_call.1} parent=1 // pred_check
      _
    $region3: #{tpu_custom_call.1} parent=1 // pred_check_branch
      %15 = sbr.rel (0) target = $region5
    $region4: #{tpu_custom_call.1} parent=1 // pred_region
      _
    $region5: #{tpu_custom_call.1} parent=1 // pred_fallthru
      _
    // Predicated region
    $region6: #{tpu_custom_call.1} parent=1 // pred_check
      _
    $region7: #{tpu_custom_call.1} parent=1 // pred_check_branch
      %17 = sbr.rel (0) target = $region9
    $region8: #{tpu_custom_call.1} parent=1 // pred_region
      _
    $region9: #{tpu_custom_call.1} parent=1 // pred_fallthru
      _
    // Predicated region
    $region10: #{tpu_custom_call.1} parent=1 // pred_check
      _
    $region11: #{tpu_custom_call.1} parent=1 // pred_check_branch
      %19 = sbr.rel (0) target = $region13
    $region12: #{tpu_custom_call.1} parent=1 // pred_region
      _
    $region13: #{tpu_custom_call.1} parent=1 // pred_fallthru
      _
    // Predicated region
    $region14: #{tpu_custom_call.1} parent=1 // pred_check
      _
    $region15: #{tpu_custom_call.1} parent=1 // pred_check_branch
      %21 = sbr.rel (0) target = $region17
    $region16: #{tpu_custom_call.1} parent=1 // pred_region
      %s23 = ssub.s32 32, 32
      %24 = vsyncadd [#allocation3], %s23
      %s26 = sshll.u32 [#allocation2], 4
      %s27 = int_to_ptr.vmem [resolvable:$true] %s26
      %29 = dma.hbm_to_vmem [thread:$0]  %s3, 32, %s27, [#allocation3]
    $region17: #{tpu_custom_call.1} parent=1 // pred_fallthru
      _
    // Predicated region
    $region18: #{tpu_custom_call.1} parent=1 // pred_check
      _
    $region19: #{tpu_custom_call.1} parent=1 // pred_check_branch
      %31 = sbr.rel (0) target = $region21
    $region20: #{tpu_custom_call.1} parent=1 // pred_region
      %s33 = ssub.s32 512, 512
      %34 = vsyncadd [#allocation5], %s33
      %s35 = sshll.u32 [#allocation4], 4
      %s36 = int_to_ptr.vmem [resolvable:$true] %s35
      %41 = dma.hbm_to_vmem [thread:$0]  %s4, 512, %s36, [#allocation5], 128, 128, 8
    $region21: #{tpu_custom_call.1} parent=1 // pred_fallthru
      _
    // Predicated region
    $region22: #{tpu_custom_call.1} parent=1 // pred_check
      _
    $region23: #{tpu_custom_call.1} parent=1 // pred_check_branch
      %43 = sbr.rel (0) target = $region25
    $region24: #{tpu_custom_call.1} parent=1 // pred_region
      _
    $region25: #{tpu_custom_call.1} parent=1 // pred_fallthru
      _
    // Predicated region
    $region26: #{tpu_custom_call.1} parent=1 // pred_check
      _
    $region27: #{tpu_custom_call.1} parent=1 // pred_check_branch
      %45 = sbr.rel (0) target = $region29
    $region28: #{tpu_custom_call.1} parent=1 // pred_region
      _
    $region29: #{tpu_custom_call.1} parent=1 // pred_fallthru
      _
    // Predicated region
    $region30: #{tpu_custom_call.1} parent=1 // pred_check
      _
    $region31: #{tpu_custom_call.1} parent=1 // pred_check_branch
      %47 = sbr.rel (0) target = $region33
    $region32: #{tpu_custom_call.1} parent=1 // pred_region
      %48 = dma.done [#allocation3], 32
    $region33: #{tpu_custom_call.1} parent=1 // pred_fallthru
      _
    // Predicated region
    $region34: #{tpu_custom_call.1} parent=1 // pred_check
      _
    $region35: #{tpu_custom_call.1} parent=1 // pred_check_branch
      %50 = sbr.rel (0) target = $region37
    $region36: #{tpu_custom_call.1} parent=1 // pred_region
      %51 = dma.done [#allocation5], 512
    $region37: #{tpu_custom_call.1} parent=1 // pred_fallthru
      _
    %v52 = vld [vmem:[%s6] sm:$0x7]
    %v53 = vld [vmem:[%s0] sm:$0xff]
    %v54 = vld [vmem:[%s2] sm:$0x3f]
    %v55 = vld [vmem:[%s1] sm:$0xff]
    %v56 = vld [vmem:[#allocation2] sm:$0x3]
    %vm57 = vcmask 15360
    %v59 = vsel %vm57, %v55, 0
    %vm61 = vcmask 1041408
    %v63 = vsel %vm61, %v56, 0
    %65 = vmatprep.subr.mxu0 0.0
    %66 = vmatpush1.msra.mxu0 %v63
    %67 = vmatprep.subr.mxu0 0.0
    %68 = vmatpush1.msra.mxu0 0.0
    %69 = vmatprep.subr.mxu0 0.0
    %70 = vmatpush1.msra.mxu0 0.0
    %71 = vmatprep.subr.mxu0 0.0
    %72 = vmatpush1.msra.mxu0 0.0
    %73 = vmatprep.subr.mxu0 0.0
    %74 = vmatpush1.msra.mxu0 0.0
    %75 = vmatprep.subr.mxu0 0.0
    %76 = vmatpush1.msra.mxu0 0.0
    %77 = vmatprep.subr.mxu0 0.0
    %78 = vmatpush1.msra.mxu0 0.0
    %79 = vmatprep.subr.mxu0 0.0
    %80 = vmatpush1.msra.mxu0 0.0
    %81 = vmatprep.subr.mxu0 0.0
    %82 = vmatpush1.msra.mxu0 0.0
    %83 = vmatprep.subr.mxu0 0.0
    %84 = vmatpush1.msra.mxu0 0.0
    %85 = vmatprep.subr.mxu0 0.0
    %86 = vmatpush1.msra.mxu0 0.0
    %87 = vmatprep.subr.mxu0 0.0
    %88 = vmatpush1.msra.mxu0 0.0
    %89 = vmatprep.subr.mxu0 0.0
    %90 = vmatpush1.msra.mxu0 0.0
    %91 = vmatprep.subr.mxu0 0.0
    %92 = vmatpush1.msra.mxu0 0.0
    %93 = vmatprep.subr.mxu0 0.0
    %94 = vmatpush1.msra.mxu0 0.0
    %95 = vmatprep.subr.mxu0 0.0
    %96 = vmatpush1.msra.mxu0 0.0
    %97 = vmatprep.subr.mxu0 0.0
    %98 = vmatpush1.msra.mxu0 0.0
    %99 = vmatprep.subr.mxu0 0.0
    %100 = vmatpush1.msra.mxu0 0.0
    %101 = vmatprep.subr.mxu0 0.0
    %102 = vmatpush1.msra.mxu0 0.0
    %103 = vmatprep.subr.mxu0 0.0
    %104 = vmatpush1.msra.mxu0 0.0
    %105 = vmatprep.subr.mxu0 0.0
    %106 = vmatpush1.msra.mxu0 0.0
    %107 = vmatprep.subr.mxu0 0.0
    %108 = vmatpush1.msra.mxu0 0.0
    %109 = vmatprep.subr.mxu0 0.0
    %110 = vmatpush1.msra.mxu0 0.0
    %111 = vmatprep.subr.mxu0 0.0
    %112 = vmatpush1.msra.mxu0 0.0
    %113 = vmatprep.subr.mxu0 0.0
    %114 = vmatpush1.msra.mxu0 0.0
    %115 = vmatprep.subr.mxu0 0.0
    %116 = vmatpush1.msra.mxu0 0.0
    %117 = vmatprep.subr.mxu0 0.0
    %118 = vmatpush1.msra.mxu0 0.0
    %119 = vmatprep.subr.mxu0 0.0
    %120 = vmatpush1.msra.mxu0 0.0
    %121 = vmatprep.subr.mxu0 0.0
    %122 = vmatpush1.msra.mxu0 0.0
    %123 = vmatprep.subr.mxu0 0.0
    %124 = vmatpush1.msra.mxu0 0.0
    %125 = vmatprep.subr.mxu0 0.0
    %126 = vmatpush1.msra.mxu0 0.0
    %127 = vmatprep.subr.mxu0 0.0
    %128 = vmatpush1.msra.mxu0 0.0
    %129 = vmatprep.mubr.f32.mxu0 0.0
    %130 = vmatmul.mubr.f32.gmra.mrb[0].mxu0 %v59
    %v131 = vpop.f32.mrb[0].mxu0
    %v132 = vadd.f32 0.0, %v131
    %v133 = vpop.f32.mrb[0].mxu0
    %134 = vdwg.mxu0
    %vm135 = vcmask 48128
    %v137 = vsel %vm135, %v53, 0
    %vm139 = vcmask 1045504
    %v141 = vsel %vm139, %v54, 0
    %143 = vmatprep.subr.mxu0 0.0
    %144 = vmatpush1.msra.mxu0 %v141
    %145 = vmatprep.subr.mxu0 0.0
    %146 = vmatpush1.msra.mxu0 0.0
    %147 = vmatprep.subr.mxu0 0.0
    %148 = vmatpush1.msra.mxu0 0.0
    %149 = vmatprep.subr.mxu0 0.0
    %150 = vmatpush1.msra.mxu0 0.0
    %151 = vmatprep.subr.mxu0 0.0
    %152 = vmatpush1.msra.mxu0 0.0
    %153 = vmatprep.subr.mxu0 0.0
    %154 = vmatpush1.msra.mxu0 0.0
    %155 = vmatprep.subr.mxu0 0.0
    %156 = vmatpush1.msra.mxu0 0.0
    %157 = vmatprep.subr.mxu0 0.0
    %158 = vmatpush1.msra.mxu0 0.0
    %159 = vmatprep.subr.mxu0 0.0
    %160 = vmatpush1.msra.mxu0 0.0
    %161 = vmatprep.subr.mxu0 0.0
    %162 = vmatpush1.msra.mxu0 0.0
    %163 = vmatprep.subr.mxu0 0.0
    %164 = vmatpush1.msra.mxu0 0.0
    %165 = vmatprep.subr.mxu0 0.0
    %166 = vmatpush1.msra.mxu0 0.0
    %167 = vmatprep.subr.mxu0 0.0
    %168 = vmatpush1.msra.mxu0 0.0
    %169 = vmatprep.subr.mxu0 0.0
    %170 = vmatpush1.msra.mxu0 0.0
    %171 = vmatprep.subr.mxu0 0.0
    %172 = vmatpush1.msra.mxu0 0.0
    %173 = vmatprep.subr.mxu0 0.0
    %174 = vmatpush1.msra.mxu0 0.0
    %175 = vmatprep.subr.mxu0 0.0
    %176 = vmatpush1.msra.mxu0 0.0
    %177 = vmatprep.subr.mxu0 0.0
    %178 = vmatpush1.msra.mxu0 0.0
    %179 = vmatprep.subr.mxu0 0.0
    %180 = vmatpush1.msra.mxu0 0.0
    %181 = vmatprep.subr.mxu0 0.0
    %182 = vmatpush1.msra.mxu0 0.0
    %183 = vmatprep.subr.mxu0 0.0
    %184 = vmatpush1.msra.mxu0 0.0
    %185 = vmatprep.subr.mxu0 0.0
    %186 = vmatpush1.msra.mxu0 0.0
    %187 = vmatprep.subr.mxu0 0.0
    %188 = vmatpush1.msra.mxu0 0.0
    %189 = vmatprep.subr.mxu0 0.0
    %190 = vmatpush1.msra.mxu0 0.0
    %191 = vmatprep.subr.mxu0 0.0
    %192 = vmatpush1.msra.mxu0 0.0
    %193 = vmatprep.subr.mxu0 0.0
    %194 = vmatpush1.msra.mxu0 0.0
    %195 = vmatprep.subr.mxu0 0.0
    %196 = vmatpush1.msra.mxu0 0.0
    %197 = vmatprep.subr.mxu0 0.0
    %198 = vmatpush1.msra.mxu0 0.0
    %199 = vmatprep.subr.mxu0 0.0
    %200 = vmatpush1.msra.mxu0 0.0
    %201 = vmatprep.subr.mxu0 0.0
    %202 = vmatpush1.msra.mxu0 0.0
    %203 = vmatprep.subr.mxu0 0.0
    %204 = vmatpush1.msra.mxu0 0.0
    %205 = vmatprep.subr.mxu0 0.0
    %206 = vmatpush1.msra.mxu0 0.0
    %207 = vmatprep.mubr.f32.mxu0 0.0
    %208 = vmatmul.mubr.f32.gmra.mrb[0].mxu0 %v137
    %v209 = vpop.f32.mrb[0].mxu0
    %v210 = vadd.f32 %v132, %v209
    %v211 = vpop.f32.mrb[0].mxu0
    %212 = vdwg.mxu0
    %v213 = vlaneseq
    %v214 = vshrl.u32 %v213, 7
    %v215 = vsub.s32 0, %v214
    %v216 = vrot.slane %v52, %v215
    %v217 = vadd.f32 %v210, %v216
    %v218 = vmax.f32 %v217, 0.0
    %v219 = vld [vmem:[#allocation4] sm:$0xff]
    %v220 = vld [vmem:[#allocation4 + $0x8] sm:$0xff]
    %v221 = vld [vmem:[#allocation4 + $0x10] sm:$0xff]
    %v222 = vld [vmem:[#allocation4 + $0x18] sm:$0xff]
    %v223 = vlaneseq
    %v224 = vshrl.u32 %v223, 7
    %v225 = vsub.s32 1, %v224
    %v226 = vrot.slane %v52, %v225
    %vm227 = vcmask 261120
    %v229 = vsel %vm227, %v218, 0
    %231 = vmatprep.subr.mxu0 0.0
    %232 = vmatpush1.msra.mxu0 %v219
    %233 = vmatprep.subr.mxu0 0.0
    %234 = vmatpush1.msra.mxu0 %v220
    %235 = vmatprep.subr.mxu0 0.0
    %236 = vmatpush1.msra.mxu0 %v221
    %237 = vmatprep.subr.mxu0 0.0
    %238 = vmatpush1.msra.mxu0 %v222
    %239 = vmatprep.subr.mxu0 0.0
    %240 = vmatpush1.msra.mxu0 0.0
    %241 = vmatprep.subr.mxu0 0.0
    %242 = vmatpush1.msra.mxu0 0.0
    %243 = vmatprep.subr.mxu0 0.0
    %244 = vmatpush1.msra.mxu0 0.0
    %245 = vmatprep.subr.mxu0 0.0
    %246 = vmatpush1.msra.mxu0 0.0
    %247 = vmatprep.subr.mxu0 0.0
    %248 = vmatpush1.msra.mxu0 0.0
    %249 = vmatprep.subr.mxu0 0.0
    %250 = vmatpush1.msra.mxu0 0.0
    %251 = vmatprep.subr.mxu0 0.0
    %252 = vmatpush1.msra.mxu0 0.0
    %253 = vmatprep.subr.mxu0 0.0
    %254 = vmatpush1.msra.mxu0 0.0
    %255 = vmatprep.subr.mxu0 0.0
    %256 = vmatpush1.msra.mxu0 0.0
    %257 = vmatprep.subr.mxu0 0.0
    %258 = vmatpush1.msra.mxu0 0.0
    %259 = vmatprep.subr.mxu0 0.0
    %260 = vmatpush1.msra.mxu0 0.0
    %261 = vmatprep.subr.mxu0 0.0
    %262 = vmatpush1.msra.mxu0 0.0
    %263 = vmatprep.subr.mxu0 0.0
    %264 = vmatpush1.msra.mxu0 0.0
    %265 = vmatprep.subr.mxu0 0.0
    %266 = vmatpush1.msra.mxu0 0.0
    %267 = vmatprep.subr.mxu0 0.0
    %268 = vmatpush1.msra.mxu0 0.0
    %269 = vmatprep.subr.mxu0 0.0
    %270 = vmatpush1.msra.mxu0 0.0
    %271 = vmatprep.subr.mxu0 0.0
    %272 = vmatpush1.msra.mxu0 0.0
    %273 = vmatprep.subr.mxu0 0.0
    %274 = vmatpush1.msra.mxu0 0.0
    %275 = vmatprep.subr.mxu0 0.0
    %276 = vmatpush1.msra.mxu0 0.0
    %277 = vmatprep.subr.mxu0 0.0
    %278 = vmatpush1.msra.mxu0 0.0
    %279 = vmatprep.subr.mxu0 0.0
    %280 = vmatpush1.msra.mxu0 0.0
    %281 = vmatprep.subr.mxu0 0.0
    %282 = vmatpush1.msra.mxu0 0.0
    %283 = vmatprep.subr.mxu0 0.0
    %284 = vmatpush1.msra.mxu0 0.0
    %285 = vmatprep.subr.mxu0 0.0
    %286 = vmatpush1.msra.mxu0 0.0
    %287 = vmatprep.subr.mxu0 0.0
    %288 = vmatpush1.msra.mxu0 0.0
    %289 = vmatprep.subr.mxu0 0.0
    %290 = vmatpush1.msra.mxu0 0.0
    %291 = vmatprep.subr.mxu0 0.0
    %292 = vmatpush1.msra.mxu0 0.0
    %293 = vmatprep.subr.mxu0 0.0
    %294 = vmatpush1.msra.mxu0 0.0
    %295 = vmatprep.mubr.f32.mxu0 0.0
    %296 = vmatmul.mubr.f32.gmra.mrb[0].mxu0 %v229
    %v297 = vpop.f32.mrb[0].mxu0
    %v298 = vadd.f32 %v226, %v297
    %v299 = vpop.f32.mrb[0].mxu0
    %300 = vdwg.mxu0
    %v301 = vmax.f32 %v298, 0.0
    %v302 = vld [vmem:[%s5] sm:$0x1]
    %v304 = vlaneseq
    %v305 = vshrl.u32 %v304, 7
    %v306 = vsub.s32 0, %v305
    %v307 = vrot.slane %v302, %v306
    %v309 = vmul.f32 %v301, %v307
    %v310 = vsel %vm227, %v309, 0.0
    %311 = vadd.xlane.f32.xlu0 %v310
    %v312 = vpop.xlane.xlu0 %311
    %v313 = vlaneseq
    %v314 = vshrl.u32 %v313, 7
    %v315 = vsub.s32 2, %v314
    %v316 = vrot.slane %v52, %v315
    %v317 = vadd.f32 %v312, %v316
    %vm318 = vcmask 7168
    %319 = vst.msk [vmem:[%s7] sm:$0xff] %vm318, %v317
    // Predicated region
    $region38: #{tpu_custom_call.1} parent=1 // pred_check
      _
    $region39: #{tpu_custom_call.1} parent=1 // pred_check_branch
      %321 = sbr.rel (0) target = $region41
    $region40: #{tpu_custom_call.1} parent=1 // pred_region
      _
    $region41: #{tpu_custom_call.1} parent=1 // pred_fallthru
      _
    // Predicated region
    $region42: #{tpu_custom_call.1} parent=1 // pred_check
      _
    $region43: #{tpu_custom_call.1} parent=1 // pred_check_branch
      %323 = sbr.rel (0) target = $region45
    $region44: #{tpu_custom_call.1} parent=1 // pred_region
      _
    $region45: #{tpu_custom_call.1} parent=1 // pred_fallthru
      _
    %324 = vsyncpa [#allocation3], 1
    %325 = vsyncpa [#allocation5], 1

</llo_original>
